<compile_context>
chip_gen: v5e
topology: v5e:2x2
jax: 0.10.0
libtpu: 0.0.40
codegen_flags: <defaults>
</compile_context>

<pallas_src>
import functools

import jax
import jax.numpy as jnp
from jax import lax
from jax.experimental import pallas as pl
from jax.experimental.pallas import tpu as pltpu


def _pick_tile(dim, prefs):
    """Largest preferred tile that evenly divides `dim`, else the full dim."""
    for p in prefs:
        if dim % p == 0:
            return p
    return dim


# ---------------------------------------------------------------------------
# Kernel 1: TransposeLinear  (torch.addmm(bias, x, weight)) -- tiled matmul
# ---------------------------------------------------------------------------
def _linear_kernel(x_ref, w_ref, b_ref, o_ref, acc_ref):
    k = pl.program_id(2)

    @pl.when(k == 0)
    def _init():
        acc_ref[...] = jnp.zeros_like(acc_ref)

    acc_ref[...] += jnp.dot(x_ref[...], w_ref[...],
                            preferred_element_type=jnp.float32)

    @pl.when(k == pl.num_programs(2) - 1)
    def _store():
        o_ref[...] = (acc_ref[...] + b_ref[...].astype(jnp.float32)).astype(o_ref.dtype)


def transpose_linear(x2d, w, b,
                     tm_prefs=(256, 128), tn_prefs=(256, 128), tk_prefs=(512, 256, 128)):
    M, K = x2d.shape
    N = w.shape[1]
    tm = _pick_tile(M, tm_prefs)
    tn = _pick_tile(N, tn_prefs)
    tk = _pick_tile(K, tk_prefs)
    grid = (M // tm, N // tn, K // tk)
    return pl.pallas_call(
        _linear_kernel,
        out_shape=jax.ShapeDtypeStruct((M, N), x2d.dtype),
        grid=grid,
        in_specs=[
            pl.BlockSpec((tm, tk), lambda i, j, k: (i, k)),
            pl.BlockSpec((tk, tn), lambda i, j, k: (k, j)),
            pl.BlockSpec((1, tn), lambda i, j, k: (0, j)),
        ],
        out_specs=pl.BlockSpec((tm, tn), lambda i, j, k: (i, j)),
        scratch_shapes=[pltpu.VMEM((tm, tn), jnp.float32)],
        compiler_params=pltpu.CompilerParams(
            dimension_semantics=("parallel", "parallel", "arbitrary")),
    )(x2d, w, b.reshape(1, N))


# ---------------------------------------------------------------------------
# Kernel 2a: flash-style causal attention (no attn_weights materialization)
# ---------------------------------------------------------------------------
def _flash_attn_kernel(q_ref, k_ref, v_ref, o_ref, m_sc, l_sc, acc_sc,
                       *, scale, masked_bias, tq, tkv):
    kvi = pl.program_id(3)
    q_start = pl.program_id(2) * tq
    kv_start = kvi * tkv

    @pl.when(kvi == 0)
    def _init():
        m_sc[...] = jnp.full_like(m_sc, -jnp.inf)
        l_sc[...] = jnp.zeros_like(l_sc)
        acc_sc[...] = jnp.zeros_like(acc_sc)

    # Causal skip: this KV tile starts after the last row of the Q tile.
    @pl.when(kv_start <= q_start + (tq - 1))
    def _compute():
        q = q_ref[0, 0] * scale          # fold 1/sqrt(D) into Q (O(tq*D), not O(tq*tkv))
        k = k_ref[0, 0]
        v = v_ref[0, 0]
        # QK^T contracting the D axes directly -- no transposed K copy.
        s = lax.dot_general(q, k, (((1,), (1,)), ((), ())),
                            preferred_element_type=jnp.float32)        # (tq, tkv)
        row = q_start + lax.broadcasted_iota(jnp.int32, (tq, tkv), 0)
        col = kv_start + lax.broadcasted_iota(jnp.int32, (tq, tkv), 1)
        s = jnp.where(col <= row, s, jnp.float32(masked_bias))

        m_prev = m_sc[...]
        m_new = jnp.maximum(m_prev, jnp.max(s, axis=-1, keepdims=True))
        alpha = jnp.exp(m_prev - m_new)
        p = jnp.exp(s - m_new)
        l_sc[...] = alpha * l_sc[...] + jnp.sum(p, axis=-1, keepdims=True)
        acc_sc[...] = alpha * acc_sc[...] + jnp.dot(
            p.astype(v.dtype), v, preferred_element_type=jnp.float32)
        m_sc[...] = m_new

    @pl.when(kvi == pl.num_programs(3) - 1)
    def _finalize():
        inv_l = pl.reciprocal(l_sc[...], approx=True)   # EUP slot, off the VPU path
        o_ref[0, 0] = (acc_sc[...] * inv_l).astype(o_ref.dtype)


def flash_attention(q, k, v, tq_prefs=(128,), tkv_prefs=(128,)):
    B, H, S, D = q.shape
    scale = 1.0 / float(D) ** 0.5
    tq = _pick_tile(S, tq_prefs)
    tkv = _pick_tile(S, tkv_prefs)
    kern = functools.partial(_flash_attn_kernel, scale=scale,
                             masked_bias=-10000.0, tq=tq, tkv=tkv)
    return pl.pallas_call(
        kern,
        out_shape=jax.ShapeDtypeStruct((B, H, S, D), q.dtype),
        grid=(B, H, S // tq, S // tkv),
        in_specs=[
            pl.BlockSpec((1, 1, tq, D), lambda b, h, qi, ki: (b, h, qi, 0)),
            pl.BlockSpec((1, 1, tkv, D), lambda b, h, qi, ki: (b, h, ki, 0)),
            pl.BlockSpec((1, 1, tkv, D), lambda b, h, qi, ki: (b, h, ki, 0)),
        ],
        out_specs=pl.BlockSpec((1, 1, tq, D), lambda b, h, qi, ki: (b, h, qi, 0)),
        scratch_shapes=[
            pltpu.VMEM((tq, 1), jnp.float32),   # running max
            pltpu.VMEM((tq, 1), jnp.float32),   # running sum
            pltpu.VMEM((tq, D), jnp.float32),   # running PV accumulator
        ],
        compiler_params=pltpu.CompilerParams(
            dimension_semantics=("parallel", "parallel", "parallel", "arbitrary")),
    )(q, k, v)


# ---------------------------------------------------------------------------
# Kernel 2b: fidelity path -- also returns softmax(attn_weights) like the module
# ---------------------------------------------------------------------------
def _attn_with_weights_kernel(q_ref, k_ref, v_ref, o_ref, w_ref,
                              *, scale, masked_bias, tq):
    q_start = pl.program_id(2) * tq
    q = q_ref[0, 0] * scale           # (tq, D)
    k = k_ref[0, 0]                   # (S, D)
    v = v_ref[0, 0]                   # (S, D)
    s = lax.dot_general(q, k, (((1,), (1,)), ((), ())),
                        preferred_element_type=jnp.float32)   # (tq, S)
    Skv = s.shape[1]
    row = q_start + lax.broadcasted_iota(jnp.int32, (tq, Skv), 0)
    col = lax.broadcasted_iota(jnp.int32, (tq, Skv), 1)
    s = jnp.where(col <= row, s, jnp.float32(masked_bias))
    m = jnp.max(s, axis=-1, keepdims=True)
    e = jnp.exp(s - m)
    p = e / jnp.sum(e, axis=-1, keepdims=True)   # exact: this path exists for fidelity
    w_ref[0, 0] = p.astype(w_ref.dtype)
    o_ref[0, 0] = jnp.dot(p.astype(v.dtype), v,
                          preferred_element_type=jnp.float32).astype(o_ref.dtype)


def attention_with_weights(q, k, v, tq_prefs=(128,)):
    B, H, S, D = q.shape
    scale = 1.0 / float(D) ** 0.5
    tq = _pick_tile(S, tq_prefs)
    kern = functools.partial(_attn_with_weights_kernel, scale=scale,
                             masked_bias=-10000.0, tq=tq)
    return pl.pallas_call(
        kern,
        out_shape=(
            jax.ShapeDtypeStruct((B, H, S, D), q.dtype),
            jax.ShapeDtypeStruct((B, H, S, S), q.dtype),
        ),
        grid=(B, H, S // tq),
        in_specs=[
            pl.BlockSpec((1, 1, tq, D), lambda b, h, qi: (b, h, qi, 0)),
            pl.BlockSpec((1, 1, S, D), lambda b, h, qi: (b, h, 0, 0)),
            pl.BlockSpec((1, 1, S, D), lambda b, h, qi: (b, h, 0, 0)),
        ],
        out_specs=(
            pl.BlockSpec((1, 1, tq, D), lambda b, h, qi: (b, h, qi, 0)),
            pl.BlockSpec((1, 1, tq, S), lambda b, h, qi: (b, h, qi, 0)),
        ),
        compiler_params=pltpu.CompilerParams(
            dimension_semantics=("parallel", "parallel", "parallel")),
    )(q, k, v)


# ---------------------------------------------------------------------------
# Forward pass (glue in plain JAX, hot paths in Pallas)
# ---------------------------------------------------------------------------
def tfmr_attention_forward(hidden_states, params, num_heads, output_attentions=False):
    B, S, E = hidden_states.shape
    D = E // num_heads

    # c_attn: (B*S, E) @ (E, 3E) + (3E,)
    x2d = hidden_states.reshape(B * S, E)
    qkv = transpose_linear(x2d, params["c_attn_w"], params["c_attn_b"])

    # (B*S, 3E) -> (3, B, H, S, D).  The head split/merge stays in XLA so every
    # Pallas block keeps its full last dim (block-shape safe for any head_dim).
    qkv = qkv.reshape(B, S, 3, num_heads, D).transpose(2, 0, 3, 1, 4)
    q, k, v = qkv[0], qkv[1], qkv[2]

    # TODO(synk): layer_past concatenation / use_cache not exercised here (present=None)
    if output_attentions:
        attn_out, attn_weights = attention_with_weights(q, k, v)
    else:
        attn_out = flash_attention(q, k, v)
        attn_weights = None   # skip the O(B*H*S^2) writeback on the fast path

    # merge heads: (B, H, S, D) -> (B*S, E)
    merged = attn_out.transpose(0, 2, 1, 3).reshape(B * S, E)

    # c_proj: (B*S, E) @ (E, E) + (E,)
    out = transpose_linear(merged, params["c_proj_w"], params["c_proj_b"]).reshape(B, S, E)

    present = None  # use_cache=False
    return out, present, attn_weights


# ---------------------------------------------------------------------------
# Pure-JAX reference (for correctness checking only)
# ---------------------------------------------------------------------------
def _reference_forward(hidden_states, params, num_heads):
    B, S, E = hidden_states.shape
    D = E // num_heads
    hp = jax.lax.Precision.HIGHEST
    x2d = hidden_states.reshape(B * S, E)
    qkv = jnp.dot(x2d, params["c_attn_w"], precision=hp) + params["c_attn_b"]
    qkv = qkv.reshape(B, S, 3, num_heads, D).transpose(2, 0, 3, 1, 4)
    q, k, v = qkv[0], qkv[1], qkv[2]
    s = jnp.einsum("bhqd,bhkd->bhqk", q, k, precision=hp) / float(D) ** 0.5
    mask = jnp.tril(jnp.ones((S, S), dtype=bool))
    s = jnp.where(mask, s, jnp.float32(-10000.0))
    p = jax.nn.softmax(s, axis=-1)
    o = jnp.einsum("bhqk,bhkd->bhqd", p, v, precision=hp)
    o = o.transpose(0, 2, 1, 3).reshape(B * S, E)
    out = jnp.dot(o, params["c_proj_w"], precision=hp) + params["c_proj_b"]
    return out.reshape(B, S, E), p


# ---------------------------------------------------------------------------
# Deterministic parameter init (matches TransposeLinear: normal(std=0.02), zero bias)
# ---------------------------------------------------------------------------
def init_params(key, embed_dim):
    k1, k2 = jax.random.split(key)
    return {
        "c_attn_w": 0.02 * jax.random.normal(k1, (embed_dim, 3 * embed_dim), jnp.float32),
        "c_attn_b": jnp.zeros((3 * embed_dim,), jnp.float32),
        "c_proj_w": 0.02 * jax.random.normal(k2, (embed_dim, embed_dim), jnp.float32),
        "c_proj_b": jnp.zeros((embed_dim,), jnp.float32),
    }


if __name__ == "__main__":
    B, S, E, H = 2, 8, 32, 4  # batch, seq, hidden_size, num_attention_heads

    key = jax.random.PRNGKey(0)
    kx, kp = jax.random.split(key)
    hidden_states = jax.random.normal(kx, (B, S, E), jnp.float32)
    params = init_params(kp, E)

    # Fast path: flash-style attention, no attn_weights materialization.
    out_fast, present, none_w = tfmr_attention_forward(hidden_states, params, H)
    # Fidelity path: returns softmaxed attn_weights like the PyTorch module.
    out_full, _, attn_weights = tfmr_attention_forward(
        hidden_states, params, H, output_attentions=True)
    jax.block_until_ready((out_fast, out_full, attn_weights))

    assert out_fast.shape == (B, S, E)
    assert attn_weights.shape == (B, H, S, S)
    assert none_w is None and present is None
    # softmax rows must sum to 1
    assert jnp.allclose(jnp.sum(attn_weights, axis=-1), 1.0, atol=1e-5)
    # both Pallas paths agree
    assert jnp.allclose(out_fast, out_full, atol=2e-3, rtol=2e-3)
    # match the pure-JAX reference of the PyTorch forward
    ref_out, ref_w = _reference_forward(hidden_states, params, H)
    assert jnp.allclose(out_fast, ref_out, atol=1e-2, rtol=1e-2)
    assert jnp.allclose(attn_weights, ref_w, atol=1e-2, rtol=1e-2)

    print("KERNEL_OK")
</pallas_src>

<mosaic_0001>
module attributes {stable_mosaic.version = 11 : i64} {
  func.func @_linear_kernel(%arg0: i32, %arg1: i32, %arg2: i32, %arg3: memref<16x32xf32, #tpu.memory_space<vmem>>, %arg4: memref<32x96xf32, #tpu.memory_space<vmem>>, %arg5: memref<1x96xf32, #tpu.memory_space<vmem>>, %arg6: memref<16x96xf32, #tpu.memory_space<vmem>>, %arg7: memref<16x96xf32, #tpu.memory_space<vmem>>) attributes {dimension_semantics = [#tpu.dimension_semantics<parallel>, #tpu.dimension_semantics<parallel>, #tpu.dimension_semantics<arbitrary>], iteration_bounds = array<i64: 1, 1, 1>, scalar_prefetch = 0 : i64, scratch_operands = 1 : i64, tpu.core_type = #tpu.core_type<tc>, window_params = [{transform_indices = @transform_0, window_bounds = array<i64: 16, 32>}, {transform_indices = @transform_1, window_bounds = array<i64: 32, 96>}, {transform_indices = @transform_2, window_bounds = array<i64: 1, 96>}, {transform_indices = @transform_3, window_bounds = array<i64: 16, 96>}]} {
    %c0_i32 = arith.constant 0 : i32
    %0 = arith.cmpi eq, %arg2, %c0_i32 : i32
    %1 = arith.extui %0 : i1 to i32
    %c0_i32_0 = arith.constant 0 : i32
    %2 = arith.cmpi ne, %1, %c0_i32_0 : i32
    scf.if %2 {
      %cst_10 = arith.constant 0.000000e+00 : f32
      %12 = vector.broadcast %cst_10 : f32 to vector<16x96xf32>
      %c0_11 = arith.constant 0 : index
      %c0_12 = arith.constant 0 : index
      %13 = vector.load %arg7[%c0_11, %c0_12] : memref<16x96xf32, #tpu.memory_space<vmem>>, vector<16x96xf32>
      tpu.vector_store %arg7[%c0_11, %c0_12], %12 {strides = array<i32>} : memref<16x96xf32, #tpu.memory_space<vmem>>, vector<16x96xf32>,
    } else {
    }
    %c0 = arith.constant 0 : index
    %c0_1 = arith.constant 0 : index
    %3 = vector.load %arg7[%c0, %c0_1] : memref<16x96xf32, #tpu.memory_space<vmem>>, vector<16x96xf32>
    %c0_2 = arith.constant 0 : index
    %c0_3 = arith.constant 0 : index
    %4 = vector.load %arg3[%c0_2, %c0_3] : memref<16x32xf32, #tpu.memory_space<vmem>>, vector<16x32xf32>
    %c0_4 = arith.constant 0 : index
    %c0_5 = arith.constant 0 : index
    %5 = vector.load %arg4[%c0_4, %c0_5] : memref<32x96xf32, #tpu.memory_space<vmem>>, vector<32x96xf32>
    %cst = arith.constant dense<0.000000e+00> : vector<16x96xf32>
    %6 = tpu.matmul %4, %5, %cst {dimension_numbers = #tpu.dot_dimension_numbers<[1], [0], [0], [1], [0, 0, 1, 1], [], []>} : vector<16x32xf32>, vector<32x96xf32>, vector<16x96xf32> -> vector<16x96xf32>
    %7 = arith.addf %3, %6 : vector<16x96xf32>
    %c0_6 = arith.constant 0 : index
    %c0_7 = arith.constant 0 : index
    %8 = vector.load %arg7[%c0_6, %c0_7] : memref<16x96xf32, #tpu.memory_space<vmem>>, vector<16x96xf32>
    tpu.vector_store %arg7[%c0_6, %c0_7], %7 {strides = array<i32>} : memref<16x96xf32, #tpu.memory_space<vmem>>, vector<16x96xf32>,
    %c0_i32_8 = arith.constant 0 : i32
    %9 = arith.cmpi eq, %arg2, %c0_i32_8 : i32
    %10 = arith.extui %9 : i1 to i32
    %c0_i32_9 = arith.constant 0 : i32
    %11 = arith.cmpi ne, %10, %c0_i32_9 : i32
    scf.if %11 {
      %c0_10 = arith.constant 0 : index
      %c0_11 = arith.constant 0 : index
      %12 = vector.load %arg7[%c0_10, %c0_11] : memref<16x96xf32, #tpu.memory_space<vmem>>, vector<16x96xf32>
      %c0_12 = arith.constant 0 : index
      %c0_13 = arith.constant 0 : index
      %13 = vector.load %arg5[%c0_12, %c0_13] : memref<1x96xf32, #tpu.memory_space<vmem>>, vector<1x96xf32>
      %14 = vector.broadcast %13 : vector<1x96xf32> to vector<16x96xf32>
      %15 = arith.addf %12, %14 : vector<16x96xf32>
      %c0_14 = arith.constant 0 : index
      %c0_15 = arith.constant 0 : index
      %16 = vector.load %arg6[%c0_14, %c0_15] : memref<16x96xf32, #tpu.memory_space<vmem>>, vector<16x96xf32>
      tpu.vector_store %arg6[%c0_14, %c0_15], %15 {strides = array<i32>} : memref<16x96xf32, #tpu.memory_space<vmem>>, vector<16x96xf32>,
    } else {
    }
    return
  }
  func.func @transform_0(%arg0: i32, %arg1: i32, %arg2: i32) -> (i32, i32) {
    %c0_i32 = arith.constant 0 : i32
    return %arg0, %arg2 : i32, i32
  }
  func.func @transform_1(%arg0: i32, %arg1: i32, %arg2: i32) -> (i32, i32) {
    %c0_i32 = arith.constant 0 : i32
    return %arg2, %arg1 : i32, i32
  }
  func.func @transform_2(%arg0: i32, %arg1: i32, %arg2: i32) -> (i32, i32) {
    %c0_i32 = arith.constant 0 : i32
    %c0_i32_0 = arith.constant 0 : i32
    return %c0_i32, %arg1 : i32, i32
  }
  func.func @transform_3(%arg0: i32, %arg1: i32, %arg2: i32) -> (i32, i32) {
    %c0_i32 = arith.constant 0 : i32
    return %arg0, %arg1 : i32, i32
  }
}

</mosaic_0001>

<llo_original>
// kernel: tpu_custom_call.1
$region0: #{tpu_custom_call.1}
  #allocation0 [shape = 'u32[]', space=smem, size = 0x4, offset = 0x4, fixed_abs, tag = 'smem constant byte address 0x4 - core index']
  #allocation1 [shape = 'u32[72,128]{1,0:T(1,128)}', space=vmem, size = 0x9000, scoped, tag = 'internal scratch']
  #allocation2 [shape = 'f32[16,96]{1,0:T(8,128)}', space=vmem, size = 0x2000, scoped, tag = 'scratch operand']
  %s0 = inlined_call_operand.hbm [shape: f32[16,32], index: 0, kind: input, shape index: {}]
  %s1 = inlined_call_operand.hbm [shape: f32[32,96], index: 1, kind: input, shape index: {}]
  %s2 = inlined_call_operand.vmem [shape: f32[1,96], index: 2, kind: input, shape index: {}]
  %s3 = inlined_call_operand.hbm [shape: f32[16,96], index: 3, kind: output, shape index: {}]
  %s4 = sld [smem:[#allocation0]]
  $region38: #{tpu_custom_call.1} parent=0
    _
  %s6 = ssub.s32 1, %s4
  %s7 = scalar_select 0, %s6, %s4
  $region1: #{tpu_custom_call.1} parent=0
    #allocation3 [shape = 'u8[8192]{0}', space=vmem, size = 0x2000, scoped, tag = 'input window, operand 0, single buffered']
    #allocation4 [shape = 's32[1]{0}', space=sflag, size = 0x4, scoped, tag = 'scoped memory for tpu_custom_call.1']
    #allocation5 [shape = 's32[1]{0}', space=sflag, size = 0x4, scoped, tag = 'scoped memory for tpu_custom_call.1']
    #allocation6 [shape = 'u8[16384]{0}', space=vmem, size = 0x4000, scoped, tag = 'input window, operand 1, single buffered']
    #allocation7 [shape = 's32[1]{0}', space=sflag, size = 0x4, scoped, tag = 'scoped memory for tpu_custom_call.1']
    #allocation8 [shape = 'u8[8192]{0}', space=vmem, size = 0x2000, scoped, tag = 'output window, operand 0, single buffered']
    %8 = vsyncpa [#allocation4], 0
    %9 = vsyncpa [#allocation7], 0
    %10 = vsyncpa [#allocation5], 0
    // Predicated region
    $region2: #{tpu_custom_call.1} parent=1 // pred_check
      _
    $region3: #{tpu_custom_call.1} parent=1 // pred_check_branch
      %12 = sbr.rel (0) target = $region5
    $region4: #{tpu_custom_call.1} parent=1 // pred_region
      %14 = vsyncadd [#allocation4], 0
      %s15 = sshll.u32 %s0, 4
      %s16 = int_to_ptr.hbm [resolvable:$true] %s15
      %s17 = sshll.u32 [#allocation3], 4
      %s18 = int_to_ptr.vmem [resolvable:$true] %s17
      %23 = dma.hbm_to_vmem [thread:$0]  %s16, 256, %s18, [#allocation4], 128, 128, 8
    $region5: #{tpu_custom_call.1} parent=1 // pred_fallthru
      _
    // Predicated region
    $region6: #{tpu_custom_call.1} parent=1 // pred_check
      _
    $region7: #{tpu_custom_call.1} parent=1 // pred_check_branch
      %25 = sbr.rel (0) target = $region9
    $region8: #{tpu_custom_call.1} parent=1 // pred_region
      %27 = vsyncadd [#allocation7], 0
      %s28 = sshll.u32 %s1, 4
      %s29 = int_to_ptr.hbm [resolvable:$true] %s28
      %s30 = sshll.u32 [#allocation6], 4
      %s31 = int_to_ptr.vmem [resolvable:$true] %s30
      %36 = dma.hbm_to_vmem [thread:$0]  %s29, 512, %s31, [#allocation7], 128, 128, 8
    $region9: #{tpu_custom_call.1} parent=1 // pred_fallthru
      _
    // Predicated region
    $region10: #{tpu_custom_call.1} parent=1 // pred_check
      _
    $region11: #{tpu_custom_call.1} parent=1 // pred_check_branch
      %38 = sbr.rel (0) target = $region13
    $region12: #{tpu_custom_call.1} parent=1 // pred_region
      _
    $region13: #{tpu_custom_call.1} parent=1 // pred_fallthru
      _
    // Predicated region
    $region14: #{tpu_custom_call.1} parent=1 // pred_check
      _
    $region15: #{tpu_custom_call.1} parent=1 // pred_check_branch
      %40 = sbr.rel (0) target = $region17
    $region16: #{tpu_custom_call.1} parent=1 // pred_region
      %42 = dma.done [#allocation4], 256
    $region17: #{tpu_custom_call.1} parent=1 // pred_fallthru
      _
    // Predicated region
    $region18: #{tpu_custom_call.1} parent=1 // pred_check
      _
    $region19: #{tpu_custom_call.1} parent=1 // pred_check_branch
      %44 = sbr.rel (0) target = $region21
    $region20: #{tpu_custom_call.1} parent=1 // pred_region
      %46 = dma.done [#allocation7], 512
    $region21: #{tpu_custom_call.1} parent=1 // pred_fallthru
      _
    %p47 = scmp.eq.s32.totalorder 0, 0
    // Predicated region
    $region22: #{tpu_custom_call.1} parent=1 // pred_check
      %p48 = pneg %p47
    $region23: #{tpu_custom_call.1} parent=1 // pred_check_branch
      %50 = sbr.rel (%p48) target = $region25
    $region24: #{tpu_custom_call.1} parent=1 // pred_region
      %vm51 = vcmask 785408
      %52 = vst.msk [vmem:[#allocation2] sm:$0xff] %vm51, 0.0
      %53 = vst.msk [vmem:[#allocation2 + $0x8] sm:$0xff] %vm51, 0.0
    $region25: #{tpu_custom_call.1} parent=1 // pred_fallthru
      _
    %v54 = vld [vmem:[#allocation2] sm:$0xff]
    %v55 = vld [vmem:[#allocation2 + $0x8] sm:$0xff]
    %v56 = vld [vmem:[#allocation3] sm:$0xff]
    %v57 = vld [vmem:[#allocation3 + $0x8] sm:$0xff]
    %v58 = vld [vmem:[#allocation6] sm:$0xff]
    %v59 = vld [vmem:[#allocation6 + $0x8] sm:$0xff]
    %v60 = vld [vmem:[#allocation6 + $0x10] sm:$0xff]
    %v61 = vld [vmem:[#allocation6 + $0x18] sm:$0xff]
    %vm62 = vcmask 261120
    %v64 = vsel %vm62, %v56, 0
    %v67 = vsel %vm62, %v57, 0
    %69 = vmatpush.msra.mxu0 0.0
    %70 = vmatpush.msra.mxu0 0.0
    %71 = vmatpush.msra.mxu0 0.0
    %72 = vmatpush.msra.mxu0 0.0
    %73 = vmatpush.msra.mxu0 0.0
    %74 = vmatpush.msra.mxu0 0.0
    %75 = vmatpush.msra.mxu0 0.0
    %76 = vmatpush.msra.mxu0 0.0
    %77 = vmatpush.msra.mxu0 0.0
    %78 = vmatpush.msra.mxu0 0.0
    %79 = vmatpush.msra.mxu0 0.0
    %80 = vmatpush.msra.mxu0 0.0
    %81 = vmatpush.msra.mxu0 %v61
    %82 = vmatpush.msra.mxu0 %v60
    %83 = vmatpush.msra.mxu0 %v59
    %84 = vmatpush.msra.mxu0 %v58
    %85 = vmatmul.f32.gmra.mxu0 %v64
    %v86 = vpop.f32.mrf.mxu0
    %v87 = vadd.f32 0.0, %v86
    %88 = vmatmul.f32.gmra.mxu0 %v67
    %v89 = vpop.f32.mrf.mxu0
    %v90 = vadd.f32 0.0, %v89
    %91 = vdwg.mxu0
    %v92 = vadd.f32 %v54, %v87
    %v93 = vadd.f32 %v55, %v90
    %vm94 = vcmask 785408
    %95 = vst.msk [vmem:[#allocation2] sm:$0xff] %vm94, %v92
    %96 = vst.msk [vmem:[#allocation2 + $0x8] sm:$0xff] %vm94, %v93
    // Predicated region
    $region26: #{tpu_custom_call.1} parent=1 // pred_check
      %p97 = pneg %p47
    $region27: #{tpu_custom_call.1} parent=1 // pred_check_branch
      %99 = sbr.rel (%p97) target = $region29
    $region28: #{tpu_custom_call.1} parent=1 // pred_region
      %v100 = vld [vmem:[#allocation2] sm:$0xff]
      %v101 = vld [vmem:[#allocation2 + $0x8] sm:$0xff]
      %v102 = vld [vmem:[%s2] sm:$0x1]
      %v104 = vperm.slane %v102, 0
      %v106 = vadd.f32 %v100, %v104
      %v107 = vadd.f32 %v101, %v104
      %108 = vst.msk [vmem:[#allocation8] sm:$0xff] %vm94, %v106
      %109 = vst.msk [vmem:[#allocation8 + $0x8] sm:$0xff] %vm94, %v107
    $region29: #{tpu_custom_call.1} parent=1 // pred_fallthru
      _
    // Predicated region
    $region30: #{tpu_custom_call.1} parent=1 // pred_check
      _
    $region31: #{tpu_custom_call.1} parent=1 // pred_check_branch
      %111 = sbr.rel (0) target = $region33
    $region32: #{tpu_custom_call.1} parent=1 // pred_region
      %113 = vsyncadd [#allocation5], 0
      %s114 = sshll.u32 [#allocation8], 4
      %s115 = int_to_ptr.vmem [resolvable:$true] %s114
      %s116 = sshll.u32 %s3, 4
      %s117 = int_to_ptr.hbm [resolvable:$true] %s116
      %122 = dma.vmem_to_hbm [thread:$0]  %s115, 256, %s117, [#allocation5], 128, 128, 8
    $region33: #{tpu_custom_call.1} parent=1 // pred_fallthru
      _
    // Predicated region
    $region34: #{tpu_custom_call.1} parent=1 // pred_check
      _
    $region35: #{tpu_custom_call.1} parent=1 // pred_check_branch
      %124 = sbr.rel (0) target = $region37
    $region36: #{tpu_custom_call.1} parent=1 // pred_region
      %126 = dma.done [#allocation5], 256
    $region37: #{tpu_custom_call.1} parent=1 // pred_fallthru
      _
    %127 = vsyncpa [#allocation4], 1
    %128 = vsyncpa [#allocation7], 1
    %129 = vsyncpa [#allocation5], 1

</llo_original>
